<compile_context>
chip_gen: v5e
topology: v5e:2x2
jax: 0.10.0
libtpu: 0.0.40
codegen_flags: <defaults>
</compile_context>

<pallas_src>
import functools

import jax
import jax.numpy as jnp
import numpy as np
from jax.experimental import pallas as pl
from jax.experimental.pallas import tpu as pltpu


# --------------------------------------------------------------------------- kernel
def gatv2_kernel(x_ref, em_ref, dstr_ref, etab_ref, wlr_ref, blr_ref,
                 we_ref, att_ref, bo_ref, out_ref, *,
                 heads, hidden, num_labels, num_real_edges):
    """Single GATv2Conv (concat heads) + ReLU, self-loops included.

    x_ref    : [N, Din]     node embeddings
    em_ref   : [E, 3]       int32 (src, dst, label); label == num_labels marks self-loops
    dstr_ref : [1, E]       int32 dst laid out along lanes (for the scatter matrix)
    etab_ref : [L, De]      edge-label embedding table
    wlr_ref  : [2, Din, HC] stacked lin_l / lin_r weights (transposed)
    blr_ref  : [2, HC]      stacked lin_l / lin_r biases
    we_ref   : [De, HC]     lin_edge weight (no bias in PyG)
    att_ref  : [1, HC]      attention vector (flattened [H, C])
    bo_ref   : [1, HC]      output bias
    out_ref  : [N, HC]
    """
    f32 = jnp.float32
    N = x_ref.shape[0]
    E = em_ref.shape[0]
    L = num_labels
    H, C = heads, hidden
    HC = H * C

    x = x_ref[...]
    em = em_ref[...]
    src_col = em[:, 0:1]                                   # [E, 1]
    dst_col = em[:, 1:2]                                   # [E, 1]
    lab_col = em[:, 2:3]                                   # [E, 1]
    dst_row = dstr_ref[...]                                # [1, E]

    # ---- gather / scatter one-hots built in-kernel (no O(E*N) HBM traffic) ----
    node_en = jax.lax.broadcasted_iota(jnp.int32, (E, N), 1)
    S = (node_en == src_col).astype(f32)                   # [E, N] row e picks its src node
    T = (node_en == dst_col).astype(f32)                   # [E, N] row e picks its dst node
    node_ne = jax.lax.broadcasted_iota(jnp.int32, (N, E), 0)
    M = (node_ne == dst_row).astype(f32)                   # [N, E] = T^T (segment-sum matrix)

    # ---- edge-embedding lookup folded in (label one-hot @ table) ----
    # Self-loop rows carry sentinel label L -> all-zero one-hot row; they receive the MEAN
    # edge embedding (PyG add_self_loops fill_value='mean') added below.
    lab_en = jax.lax.broadcasted_iota(jnp.int32, (E, L), 1)
    Lhot = (lab_en == lab_col).astype(f32)                 # [E, L]
    etab = etab_ref[...]
    e_feat = jnp.dot(Lhot, etab, preferred_element_type=f32)            # [E, De]
    hist = jnp.sum(Lhot, axis=0, keepdims=True)                         # [1, L]
    mean_e = jnp.dot(hist, etab, preferred_element_type=f32) * (1.0 / num_real_edges)
    is_loop = (lab_col >= L).astype(f32)                                # [E, 1]
    e_feat = e_feat + is_loop * mean_e                                  # [E, De]

    # ---- linear projections ----
    blr = blr_ref[...]
    xl = jnp.dot(x, wlr_ref[0], preferred_element_type=f32) + blr[0:1, :]   # [N, HC] lin_l
    xr = jnp.dot(x, wlr_ref[1], preferred_element_type=f32) + blr[1:2, :]   # [N, HC] lin_r
    ee = jnp.dot(e_feat, we_ref[...], preferred_element_type=f32)           # [E, HC]

    # ---- per-edge gathers as one-hot matmuls (MXU) ----
    xl_src = jnp.dot(S, xl, preferred_element_type=f32)    # [E, HC]  x_j (source)
    xr_dst = jnp.dot(T, xr, preferred_element_type=f32)    # [E, HC]  x_i (target)

    # ---- GATv2 attention logits ----
    z = xl_src + xr_dst + ee
    z = jnp.where(z > 0, z, 0.2 * z)                       # LeakyReLU(0.2)
    za = z * att_ref[...]                                  # [E, HC]

    # ---- per-head score + per-SEGMENT max, kept lane-broadcast over each head block ----
    col = jax.lax.broadcasted_iota(jnp.int32, (1, HC), 1)  # [1, HC] lane index
    neg = jnp.float32(-1e30)
    scores_b = jnp.zeros((E, HC), f32)                     # score[e,h] broadcast over block h
    segmax_b = jnp.zeros((E, HC), f32)                     # per-target max, same layout
    for h in range(H):                                     # H is tiny & static -> unrolled
        blk = jnp.logical_and(col >= h * C, col < (h + 1) * C).astype(f32)      # [1, HC]
        sc_h = jnp.sum(za * blk, axis=1, keepdims=True)    # [E, 1] masked lane reduce (XLU)
        masked = jnp.where(T > 0.5, sc_h, neg)             # [E, N]
        m_n = jnp.max(masked, axis=0, keepdims=True)       # [1, N] per-node max of in-edges
        m_e = jnp.sum(jnp.where(T > 0.5, m_n, 0.0), axis=1, keepdims=True)       # [E, 1]
        scores_b = scores_b + sc_h * blk
        segmax_b = segmax_b + m_e * blk

    # ---- segment softmax over incoming edges of each target node ----
    exp_b = jnp.exp(scores_b - segmax_b)                                 # [E, HC]
    denom_n = jnp.dot(M, exp_b, preferred_element_type=f32)              # [N, HC] segment sum
    denom_e = jnp.dot(T, denom_n, preferred_element_type=f32)            # [E, HC] gather back
    alpha_b = exp_b / denom_e                                            # [E, HC]

    # ---- weighted messages, scatter-add, bias, ReLU ----
    msg = xl_src * alpha_b                                               # [E, HC]
    out_n = jnp.dot(M, msg, preferred_element_type=f32)                  # [N, HC]
    out_ref[...] = jnp.maximum(out_n + bo_ref[...], 0.0)


# --------------------------------------------------------------------------- wrapper
@functools.partial(jax.jit, static_argnames=("num_nodes", "heads", "hidden"))
def dependency_gnn_forward(params, node_embeds, edge_index, edge_attrs, *,
                           num_nodes, heads, hidden):
    N = num_nodes
    E0 = edge_index.shape[1]
    L, _ = params["edge_emb"].shape
    HC = heads * hidden

    # glue: append self-loops (PyG GATv2Conv add_self_loops=True); labels get sentinel L
    loop_ids = jnp.arange(N, dtype=jnp.int32)
    src = jnp.concatenate([edge_index[0].astype(jnp.int32), loop_ids])
    dst = jnp.concatenate([edge_index[1].astype(jnp.int32), loop_ids])
    lab = jnp.concatenate([edge_attrs[:, 0].astype(jnp.int32),
                           jnp.full((N,), L, dtype=jnp.int32)])
    edge_meta = jnp.stack([src, dst, lab], axis=1)          # [E, 3] int32
    dst_row = dst[None, :]                                  # [1, E] int32

    kernel = functools.partial(gatv2_kernel, heads=heads, hidden=hidden,
                               num_labels=L, num_real_edges=E0)
    vmem = pl.BlockSpec(memory_space=pltpu.MemorySpace.VMEM)
    return pl.pallas_call(
        kernel,
        out_shape=jax.ShapeDtypeStruct((N, HC), jnp.float32),
        in_specs=[vmem] * 9,
        out_specs=vmem,
    )(node_embeds, edge_meta, dst_row, params["edge_emb"],
      params["w_lr_t"], params["b_lr"], params["we_t"],
      params["att"], params["b_out"])


# --------------------------------------------------------------------------- pure-JAX reference
def reference_forward(params, node_embeds, edge_index, edge_attrs, num_nodes, heads, hidden):
    N, H, C = num_nodes, heads, hidden
    HC = H * C
    De = params["edge_emb"].shape[1]

    # PyG GATv2Conv(add_self_loops=True, fill_value='mean') edge augmentation
    e_real = params["edge_emb"][edge_attrs[:, 0]]                          # [E0, De]
    loop_feat = jnp.broadcast_to(jnp.mean(e_real, axis=0, keepdims=True), (N, De))
    e = jnp.concatenate([e_real, loop_feat], axis=0)                       # [E, De]
    loop_ids = jnp.arange(N, dtype=jnp.int32)
    src = jnp.concatenate([edge_index[0].astype(jnp.int32), loop_ids])
    dst = jnp.concatenate([edge_index[1].astype(jnp.int32), loop_ids])
    E = src.shape[0]

    xl = node_embeds @ params["w_lr_t"][0] + params["b_lr"][0:1, :]
    xr = node_embeds @ params["w_lr_t"][1] + params["b_lr"][1:2, :]
    ee = e @ params["we_t"]
    z = xl[src] + xr[dst] + ee
    z = jnp.where(z > 0, z, 0.2 * z)
    scores = (z.reshape(E, H, C) * params["att"].reshape(1, H, C)).sum(-1)   # [E, H]
    smax = jax.ops.segment_max(scores, dst, num_segments=N)
    exp_s = jnp.exp(scores - smax[dst])
    den = jax.ops.segment_sum(exp_s, dst, num_segments=N)
    alpha = exp_s / den[dst]
    msg = (xl[src].reshape(E, H, C) * alpha[:, :, None]).reshape(E, HC)
    out = jax.ops.segment_sum(msg, dst, num_segments=N) + params["b_out"]
    return jnp.maximum(out, 0.0)


# --------------------------------------------------------------------------- main
if __name__ == "__main__":
    # Module hyper-params (small but consistent with __init__): num_gnn_layers=1
    num_dependency_labels = 10
    input_embedding_dim = 32
    gnn_hidden_dim = 16          # C
    edge_embedding_dim = 16      # De
    num_gnn_heads = 3            # H
    N = 8                        # nodes (tokens)
    E0 = 8                       # dependency arcs
    HC = num_gnn_heads * gnn_hidden_dim

    key = jax.random.PRNGKey(0)
    ks = jax.random.split(key, 11)

    wl_t = 0.1 * jax.random.normal(ks[1], (input_embedding_dim, HC), jnp.float32)
    wr_t = 0.1 * jax.random.normal(ks[2], (input_embedding_dim, HC), jnp.float32)
    bl = 0.1 * jax.random.normal(ks[3], (1, HC), jnp.float32)
    br = 0.1 * jax.random.normal(ks[4], (1, HC), jnp.float32)

    params = {
        "edge_emb": 0.1 * jax.random.normal(ks[0], (num_dependency_labels, edge_embedding_dim), jnp.float32),
        "w_lr_t": jnp.stack([wl_t, wr_t], axis=0),           # [2, Din, HC]  lin_l | lin_r
        "b_lr":   jnp.concatenate([bl, br], axis=0),         # [2, HC]
        "we_t":   0.1 * jax.random.normal(ks[5], (edge_embedding_dim, HC), jnp.float32),
        "att":    0.1 * jax.random.normal(ks[6], (1, HC), jnp.float32),
        "b_out":  0.1 * jax.random.normal(ks[7], (1, HC), jnp.float32),
    }

    node_embeds = jax.random.normal(ks[8], (N, input_embedding_dim), jnp.float32)
    src = jnp.arange(E0, dtype=jnp.int32)
    # dst != src so PyG's remove_self_loops-before-add_self_loops is a no-op here
    dst = (src + 1 + jax.random.randint(ks[9], (E0,), 0, N - 1, dtype=jnp.int32)) % N
    edge_index = jnp.stack([src, dst], axis=0)                             # [2, E0]
    edge_attrs = jax.random.randint(ks[10], (E0, 1), 0,
                                    num_dependency_labels, dtype=jnp.int32)  # [E0, 1]

    out = dependency_gnn_forward(params, node_embeds, edge_index, edge_attrs,
                                 num_nodes=N, heads=num_gnn_heads, hidden=gnn_hidden_dim)
    out = jax.block_until_ready(out)

    ref = reference_forward(params, node_embeds, edge_index, edge_attrs,
                            N, num_gnn_heads, gnn_hidden_dim)
    np.testing.assert_allclose(np.asarray(out), np.asarray(ref), rtol=1e-5, atol=1e-5)

    print("KERNEL_OK")
</pallas_src>

<mosaic_0001>
module attributes {stable_mosaic.version = 11 : i64} {
  func.func @gatv2_kernel(%arg0: memref<8x32xf32, #tpu.memory_space<vmem>>, %arg1: memref<16x3xi32, #tpu.memory_space<vmem>>, %arg2: memref<1x16xi32, #tpu.memory_space<vmem>>, %arg3: memref<10x16xf32, #tpu.memory_space<vmem>>, %arg4: memref<2x32x48xf32, #tpu.memory_space<vmem>>, %arg5: memref<2x48xf32, #tpu.memory_space<vmem>>, %arg6: memref<16x48xf32, #tpu.memory_space<vmem>>, %arg7: memref<1x48xf32, #tpu.memory_space<vmem>>, %arg8: memref<1x48xf32, #tpu.memory_space<vmem>>, %arg9: memref<8x48xf32, #tpu.memory_space<vmem>>) attributes {dimension_semantics = [], scalar_prefetch = 0 : i64, scratch_operands = 0 : i64, tpu.core_type = #tpu.core_type<tc>} {
    %c0 = arith.constant 0 : index
    %c0_0 = arith.constant 0 : index
    %0 = vector.load %arg0[%c0, %c0_0] : memref<8x32xf32, #tpu.memory_space<vmem>>, vector<8x32xf32>
    %c0_1 = arith.constant 0 : index
    %c0_2 = arith.constant 0 : index
    %1 = vector.load %arg1[%c0_1, %c0_2] : memref<16x3xi32, #tpu.memory_space<vmem>>, vector<16x3xi32>
    %2 = vector.extract_strided_slice %1 {offsets = [0, 0], sizes = [16, 1], strides = [1, 1]} : vector<16x3xi32> to vector<16x1xi32>
    %3 = vector.extract_strided_slice %1 {offsets = [0, 1], sizes = [16, 1], strides = [1, 1]} : vector<16x3xi32> to vector<16x1xi32>
    %4 = vector.extract_strided_slice %1 {offsets = [0, 2], sizes = [16, 1], strides = [1, 1]} : vector<16x3xi32> to vector<16x1xi32>
    %c0_3 = arith.constant 0 : index
    %c0_4 = arith.constant 0 : index
    %5 = vector.load %arg2[%c0_3, %c0_4] : memref<1x16xi32, #tpu.memory_space<vmem>>, vector<1x16xi32>
    %6 = tpu.iota {dimensions = array<i32: 1>} : vector<16x8xi32>
    %7 = vector.broadcast %2 : vector<16x1xi32> to vector<16x8xi32>
    %8 = arith.cmpi eq, %6, %7 : vector<16x8xi32>
    %9 = arith.extui %8 : vector<16x8xi1> to vector<16x8xi32>
    %10 = arith.sitofp %9 : vector<16x8xi32> to vector<16x8xf32>
    %11 = vector.broadcast %3 : vector<16x1xi32> to vector<16x8xi32>
    %12 = arith.cmpi eq, %6, %11 : vector<16x8xi32>
    %13 = arith.extui %12 : vector<16x8xi1> to vector<16x8xi32>
    %14 = arith.sitofp %13 : vector<16x8xi32> to vector<16x8xf32>
    %15 = tpu.iota {dimensions = array<i32: 0>} : vector<8x16xi32>
    %16 = vector.broadcast %5 : vector<1x16xi32> to vector<8x16xi32>
    %17 = arith.cmpi eq, %15, %16 : vector<8x16xi32>
    %18 = arith.extui %17 : vector<8x16xi1> to vector<8x16xi32>
    %19 = arith.sitofp %18 : vector<8x16xi32> to vector<8x16xf32>
    %20 = tpu.iota {dimensions = array<i32: 1>} : vector<16x10xi32>
    %21 = vector.broadcast %4 : vector<16x1xi32> to vector<16x10xi32>
    %22 = arith.cmpi eq, %20, %21 : vector<16x10xi32>
    %23 = arith.extui %22 : vector<16x10xi1> to vector<16x10xi32>
    %24 = arith.sitofp %23 : vector<16x10xi32> to vector<16x10xf32>
    %c0_5 = arith.constant 0 : index
    %c0_6 = arith.constant 0 : index
    %25 = vector.load %arg3[%c0_5, %c0_6] : memref<10x16xf32, #tpu.memory_space<vmem>>, vector<10x16xf32>
    %cst = arith.constant dense<0.000000e+00> : vector<16x16xf32>
    %26 = tpu.matmul %24, %25, %cst {dimension_numbers = #tpu.dot_dimension_numbers<[1], [0], [0], [1], [0, 0, 1, 1], [], []>} : vector<16x10xf32>, vector<10x16xf32>, vector<16x16xf32> -> vector<16x16xf32>
    %cst_7 = arith.constant dense<0.000000e+00> : vector<10xf32>
    %27 = vector.multi_reduction <add>, %24, %cst_7 [0] : vector<16x10xf32> to vector<10xf32>
    %28 = vector.shape_cast %27 : vector<10xf32> to vector<1x10xf32>
    %cst_8 = arith.constant dense<0.000000e+00> : vector<1x16xf32>
    %29 = tpu.matmul %28, %25, %cst_8 {dimension_numbers = #tpu.dot_dimension_numbers<[1], [0], [0], [1], [0, 0, 1, 1], [], []>} : vector<1x10xf32>, vector<10x16xf32>, vector<1x16xf32> -> vector<1x16xf32>
    %cst_9 = arith.constant 1.250000e-01 : f32
    %30 = vector.broadcast %cst_9 : f32 to vector<1x16xf32>
    %31 = arith.mulf %29, %30 : vector<1x16xf32>
    %c10_i32 = arith.constant 10 : i32
    %32 = vector.broadcast %c10_i32 : i32 to vector<16x1xi32>
    %33 = arith.cmpi sge, %4, %32 : vector<16x1xi32>
    %34 = arith.extui %33 : vector<16x1xi1> to vector<16x1xi32>
    %35 = arith.sitofp %34 : vector<16x1xi32> to vector<16x1xf32>
    %36 = vector.broadcast %35 : vector<16x1xf32> to vector<16x16xf32>
    %37 = vector.broadcast %31 : vector<1x16xf32> to vector<16x16xf32>
    %38 = arith.mulf %36, %37 : vector<16x16xf32>
    %39 = arith.addf %26, %38 : vector<16x16xf32>
    %c0_10 = arith.constant 0 : index
    %c0_11 = arith.constant 0 : index
    %40 = vector.load %arg5[%c0_10, %c0_11] : memref<2x48xf32, #tpu.memory_space<vmem>>, vector<2x48xf32>
    %c0_12 = arith.constant 0 : index
    %c0_13 = arith.constant 0 : index
    %c0_14 = arith.constant 0 : index
    %41 = vector.load %arg4[%c0_12, %c0_13, %c0_14] : memref<2x32x48xf32, #tpu.memory_space<vmem>>, vector<1x32x48xf32>
    %42 = vector.shape_cast %41 : vector<1x32x48xf32> to vector<32x48xf32>
    %cst_15 = arith.constant dense<0.000000e+00> : vector<8x48xf32>
    %43 = tpu.matmul %0, %42, %cst_15 {dimension_numbers = #tpu.dot_dimension_numbers<[1], [0], [0], [1], [0, 0, 1, 1], [], []>} : vector<8x32xf32>, vector<32x48xf32>, vector<8x48xf32> -> vector<8x48xf32>
    %44 = vector.extract_strided_slice %40 {offsets = [0, 0], sizes = [1, 48], strides = [1, 1]} : vector<2x48xf32> to vector<1x48xf32>
    %45 = vector.broadcast %44 : vector<1x48xf32> to vector<8x48xf32>
    %46 = arith.addf %43, %45 : vector<8x48xf32>
    %c1 = arith.constant 1 : index
    %c0_16 = arith.constant 0 : index
    %c0_17 = arith.constant 0 : index
    %47 = vector.load %arg4[%c1, %c0_16, %c0_17] : memref<2x32x48xf32, #tpu.memory_space<vmem>>, vector<1x32x48xf32>
    %48 = vector.shape_cast %47 : vector<1x32x48xf32> to vector<32x48xf32>
    %cst_18 = arith.constant dense<0.000000e+00> : vector<8x48xf32>
    %49 = tpu.matmul %0, %48, %cst_18 {dimension_numbers = #tpu.dot_dimension_numbers<[1], [0], [0], [1], [0, 0, 1, 1], [], []>} : vector<8x32xf32>, vector<32x48xf32>, vector<8x48xf32> -> vector<8x48xf32>
    %50 = vector.extract_strided_slice %40 {offsets = [1, 0], sizes = [1, 48], strides = [1, 1]} : vector<2x48xf32> to vector<1x48xf32>
    %51 = vector.broadcast %50 : vector<1x48xf32> to vector<8x48xf32>
    %52 = arith.addf %49, %51 : vector<8x48xf32>
    %c0_19 = arith.constant 0 : index
    %c0_20 = arith.constant 0 : index
    %53 = vector.load %arg6[%c0_19, %c0_20] : memref<16x48xf32, #tpu.memory_space<vmem>>, vector<16x48xf32>
    %cst_21 = arith.constant dense<0.000000e+00> : vector<16x48xf32>
    %54 = tpu.matmul %39, %53, %cst_21 {dimension_numbers = #tpu.dot_dimension_numbers<[1], [0], [0], [1], [0, 0, 1, 1], [], []>} : vector<16x16xf32>, vector<16x48xf32>, vector<16x48xf32> -> vector<16x48xf32>
    %cst_22 = arith.constant dense<0.000000e+00> : vector<16x48xf32>
    %55 = tpu.matmul %10, %46, %cst_22 {dimension_numbers = #tpu.dot_dimension_numbers<[1], [0], [0], [1], [0, 0, 1, 1], [], []>} : vector<16x8xf32>, vector<8x48xf32>, vector<16x48xf32> -> vector<16x48xf32>
    %cst_23 = arith.constant dense<0.000000e+00> : vector<16x48xf32>
    %56 = tpu.matmul %14, %52, %cst_23 {dimension_numbers = #tpu.dot_dimension_numbers<[1], [0], [0], [1], [0, 0, 1, 1], [], []>} : vector<16x8xf32>, vector<8x48xf32>, vector<16x48xf32> -> vector<16x48xf32>
    %57 = arith.addf %55, %56 : vector<16x48xf32>
    %58 = arith.addf %57, %54 : vector<16x48xf32>
    %cst_24 = arith.constant 0.000000e+00 : f32
    %59 = vector.broadcast %cst_24 : f32 to vector<16x48xf32>
    %60 = arith.cmpf ogt, %58, %59 : vector<16x48xf32>
    %cst_25 = arith.constant 2.000000e-01 : f32
    %61 = vector.broadcast %cst_25 : f32 to vector<16x48xf32>
    %62 = arith.mulf %61, %58 : vector<16x48xf32>
    %63 = arith.select %60, %58, %62 : vector<16x48xi1>, vector<16x48xf32>
    %c0_26 = arith.constant 0 : index
    %c0_27 = arith.constant 0 : index
    %64 = vector.load %arg7[%c0_26, %c0_27] : memref<1x48xf32, #tpu.memory_space<vmem>>, vector<1x48xf32>
    %65 = vector.broadcast %64 : vector<1x48xf32> to vector<16x48xf32>
    %66 = arith.mulf %63, %65 : vector<16x48xf32>
    %67 = tpu.iota {dimensions = array<i32: 1>} : vector<1x48xi32>
    %cst_28 = arith.constant 0.000000e+00 : f32
    %68 = vector.broadcast %cst_28 : f32 to vector<16x48xf32>
    %cst_29 = arith.constant 0.000000e+00 : f32
    %69 = vector.broadcast %cst_29 : f32 to vector<16x48xf32>
    %c0_i32 = arith.constant 0 : i32
    %70 = vector.broadcast %c0_i32 : i32 to vector<1x48xi32>
    %71 = arith.cmpi sge, %67, %70 : vector<1x48xi32>
    %c16_i32 = arith.constant 16 : i32
    %72 = vector.broadcast %c16_i32 : i32 to vector<1x48xi32>
    %73 = arith.cmpi slt, %67, %72 : vector<1x48xi32>
    %74 = arith.andi %71, %73 : vector<1x48xi1>
    %75 = arith.extui %74 : vector<1x48xi1> to vector<1x48xi32>
    %76 = arith.sitofp %75 : vector<1x48xi32> to vector<1x48xf32>
    %77 = vector.broadcast %76 : vector<1x48xf32> to vector<16x48xf32>
    %78 = arith.mulf %66, %77 : vector<16x48xf32>
    %cst_30 = arith.constant dense<0.000000e+00> : vector<16xf32>
    %79 = vector.multi_reduction <add>, %78, %cst_30 [1] : vector<16x48xf32> to vector<16xf32>
    %80 = vector.shape_cast %79 : vector<16xf32> to vector<16x1xf32>
    %cst_31 = arith.constant 5.000000e-01 : f32
    %81 = vector.broadcast %cst_31 : f32 to vector<16x8xf32>
    %82 = arith.cmpf ogt, %14, %81 : vector<16x8xf32>
    %cst_32 = arith.constant -1.000000e+30 : f32
    %83 = vector.shape_cast %80 : vector<16x1xf32> to vector<16x1xf32>
    %84 = vector.broadcast %83 : vector<16x1xf32> to vector<16x8xf32>
    %85 = vector.broadcast %cst_32 : f32 to vector<16x8xf32>
    %86 = arith.select %82, %84, %85 : vector<16x8xi1>, vector<16x8xf32>
    %cst_33 = arith.constant dense<0xFF800000> : vector<8xf32>
    %87 = vector.multi_reduction <maximumf>, %86, %cst_33 [0] : vector<16x8xf32> to vector<8xf32>
    %88 = vector.shape_cast %87 : vector<8xf32> to vector<1x8xf32>
    %cst_34 = arith.constant 5.000000e-01 : f32
    %89 = vector.broadcast %cst_34 : f32 to vector<16x8xf32>
    %90 = arith.cmpf ogt, %14, %89 : vector<16x8xf32>
    %cst_35 = arith.constant 0.000000e+00 : f32
    %91 = vector.shape_cast %88 : vector<1x8xf32> to vector<1x8xf32>
    %92 = vector.broadcast %91 : vector<1x8xf32> to vector<16x8xf32>
    %93 = vector.broadcast %cst_35 : f32 to vector<16x8xf32>
    %94 = arith.select %90, %92, %93 : vector<16x8xi1>, vector<16x8xf32>
    %cst_36 = arith.constant dense<0.000000e+00> : vector<16xf32>
    %95 = vector.multi_reduction <add>, %94, %cst_36 [1] : vector<16x8xf32> to vector<16xf32>
    %96 = vector.shape_cast %95 : vector<16xf32> to vector<16x1xf32>
    %97 = vector.broadcast %80 : vector<16x1xf32> to vector<16x48xf32>
    %98 = vector.broadcast %76 : vector<1x48xf32> to vector<16x48xf32>
    %99 = arith.mulf %97, %98 : vector<16x48xf32>
    %100 = arith.addf %68, %99 : vector<16x48xf32>
    %101 = vector.broadcast %96 : vector<16x1xf32> to vector<16x48xf32>
    %102 = vector.broadcast %76 : vector<1x48xf32> to vector<16x48xf32>
    %103 = arith.mulf %101, %102 : vector<16x48xf32>
    %104 = arith.addf %69, %103 : vector<16x48xf32>
    %c16_i32_37 = arith.constant 16 : i32
    %105 = vector.broadcast %c16_i32_37 : i32 to vector<1x48xi32>
    %106 = arith.cmpi sge, %67, %105 : vector<1x48xi32>
    %c32_i32 = arith.constant 32 : i32
    %107 = vector.broadcast %c32_i32 : i32 to vector<1x48xi32>
    %108 = arith.cmpi slt, %67, %107 : vector<1x48xi32>
    %109 = arith.andi %106, %108 : vector<1x48xi1>
    %110 = arith.extui %109 : vector<1x48xi1> to vector<1x48xi32>
    %111 = arith.sitofp %110 : vector<1x48xi32> to vector<1x48xf32>
    %112 = vector.broadcast %111 : vector<1x48xf32> to vector<16x48xf32>
    %113 = arith.mulf %66, %112 : vector<16x48xf32>
    %cst_38 = arith.constant dense<0.000000e+00> : vector<16xf32>
    %114 = vector.multi_reduction <add>, %113, %cst_38 [1] : vector<16x48xf32> to vector<16xf32>
    %115 = vector.shape_cast %114 : vector<16xf32> to vector<16x1xf32>
    %cst_39 = arith.constant 5.000000e-01 : f32
    %116 = vector.broadcast %cst_39 : f32 to vector<16x8xf32>
    %117 = arith.cmpf ogt, %14, %116 : vector<16x8xf32>
    %cst_40 = arith.constant -1.000000e+30 : f32
    %118 = vector.shape_cast %115 : vector<16x1xf32> to vector<16x1xf32>
    %119 = vector.broadcast %118 : vector<16x1xf32> to vector<16x8xf32>
    %120 = vector.broadcast %cst_40 : f32 to vector<16x8xf32>
    %121 = arith.select %117, %119, %120 : vector<16x8xi1>, vector<16x8xf32>
    %cst_41 = arith.constant dense<0xFF800000> : vector<8xf32>
    %122 = vector.multi_reduction <maximumf>, %121, %cst_41 [0] : vector<16x8xf32> to vector<8xf32>
    %123 = vector.shape_cast %122 : vector<8xf32> to vector<1x8xf32>
    %cst_42 = arith.constant 5.000000e-01 : f32
    %124 = vector.broadcast %cst_42 : f32 to vector<16x8xf32>
    %125 = arith.cmpf ogt, %14, %124 : vector<16x8xf32>
    %cst_43 = arith.constant 0.000000e+00 : f32
    %126 = vector.shape_cast %123 : vector<1x8xf32> to vector<1x8xf32>
    %127 = vector.broadcast %126 : vector<1x8xf32> to vector<16x8xf32>
    %128 = vector.broadcast %cst_43 : f32 to vector<16x8xf32>
    %129 = arith.select %125, %127, %128 : vector<16x8xi1>, vector<16x8xf32>
    %cst_44 = arith.constant dense<0.000000e+00> : vector<16xf32>
    %130 = vector.multi_reduction <add>, %129, %cst_44 [1] : vector<16x8xf32> to vector<16xf32>
    %131 = vector.shape_cast %130 : vector<16xf32> to vector<16x1xf32>
    %132 = vector.broadcast %115 : vector<16x1xf32> to vector<16x48xf32>
    %133 = vector.broadcast %111 : vector<1x48xf32> to vector<16x48xf32>
    %134 = arith.mulf %132, %133 : vector<16x48xf32>
    %135 = arith.addf %100, %134 : vector<16x48xf32>
    %136 = vector.broadcast %131 : vector<16x1xf32> to vector<16x48xf32>
    %137 = vector.broadcast %111 : vector<1x48xf32> to vector<16x48xf32>
    %138 = arith.mulf %136, %137 : vector<16x48xf32>
    %139 = arith.addf %104, %138 : vector<16x48xf32>
    %c32_i32_45 = arith.constant 32 : i32
    %140 = vector.broadcast %c32_i32_45 : i32 to vector<1x48xi32>
    %141 = arith.cmpi sge, %67, %140 : vector<1x48xi32>
    %c48_i32 = arith.constant 48 : i32
    %142 = vector.broadcast %c48_i32 : i32 to vector<1x48xi32>
    %143 = arith.cmpi slt, %67, %142 : vector<1x48xi32>
    %144 = arith.andi %141, %143 : vector<1x48xi1>
    %145 = arith.extui %144 : vector<1x48xi1> to vector<1x48xi32>
    %146 = arith.sitofp %145 : vector<1x48xi32> to vector<1x48xf32>
    %147 = vector.broadcast %146 : vector<1x48xf32> to vector<16x48xf32>
    %148 = arith.mulf %66, %147 : vector<16x48xf32>
    %cst_46 = arith.constant dense<0.000000e+00> : vector<16xf32>
    %149 = vector.multi_reduction <add>, %148, %cst_46 [1] : vector<16x48xf32> to vector<16xf32>
    %150 = vector.shape_cast %149 : vector<16xf32> to vector<16x1xf32>
    %cst_47 = arith.constant 5.000000e-01 : f32
    %151 = vector.broadcast %cst_47 : f32 to vector<16x8xf32>
    %152 = arith.cmpf ogt, %14, %151 : vector<16x8xf32>
    %cst_48 = arith.constant -1.000000e+30 : f32
    %153 = vector.shape_cast %150 : vector<16x1xf32> to vector<16x1xf32>
    %154 = vector.broadcast %153 : vector<16x1xf32> to vector<16x8xf32>
    %155 = vector.broadcast %cst_48 : f32 to vector<16x8xf32>
    %156 = arith.select %152, %154, %155 : vector<16x8xi1>, vector<16x8xf32>
    %cst_49 = arith.constant dense<0xFF800000> : vector<8xf32>
    %157 = vector.multi_reduction <maximumf>, %156, %cst_49 [0] : vector<16x8xf32> to vector<8xf32>
    %158 = vector.shape_cast %157 : vector<8xf32> to vector<1x8xf32>
    %cst_50 = arith.constant 5.000000e-01 : f32
    %159 = vector.broadcast %cst_50 : f32 to vector<16x8xf32>
    %160 = arith.cmpf ogt, %14, %159 : vector<16x8xf32>
    %cst_51 = arith.constant 0.000000e+00 : f32
    %161 = vector.shape_cast %158 : vector<1x8xf32> to vector<1x8xf32>
    %162 = vector.broadcast %161 : vector<1x8xf32> to vector<16x8xf32>
    %163 = vector.broadcast %cst_51 : f32 to vector<16x8xf32>
    %164 = arith.select %160, %162, %163 : vector<16x8xi1>, vector<16x8xf32>
    %cst_52 = arith.constant dense<0.000000e+00> : vector<16xf32>
    %165 = vector.multi_reduction <add>, %164, %cst_52 [1] : vector<16x8xf32> to vector<16xf32>
    %166 = vector.shape_cast %165 : vector<16xf32> to vector<16x1xf32>
    %167 = vector.broadcast %150 : vector<16x1xf32> to vector<16x48xf32>
    %168 = vector.broadcast %146 : vector<1x48xf32> to vector<16x48xf32>
    %169 = arith.mulf %167, %168 : vector<16x48xf32>
    %170 = arith.addf %135, %169 : vector<16x48xf32>
    %171 = vector.broadcast %166 : vector<16x1xf32> to vector<16x48xf32>
    %172 = vector.broadcast %146 : vector<1x48xf32> to vector<16x48xf32>
    %173 = arith.mulf %171, %172 : vector<16x48xf32>
    %174 = arith.addf %139, %173 : vector<16x48xf32>
    %175 = arith.subf %170, %174 : vector<16x48xf32>
    %176 = math.exp %175 : vector<16x48xf32>
    %cst_53 = arith.constant dense<0.000000e+00> : vector<8x48xf32>
    %177 = tpu.matmul %19, %176, %cst_53 {dimension_numbers = #tpu.dot_dimension_numbers<[1], [0], [0], [1], [0, 0, 1, 1], [], []>} : vector<8x16xf32>, vector<16x48xf32>, vector<8x48xf32> -> vector<8x48xf32>
    %cst_54 = arith.constant dense<0.000000e+00> : vector<16x48xf32>
    %178 = tpu.matmul %14, %177, %cst_54 {dimension_numbers = #tpu.dot_dimension_numbers<[1], [0], [0], [1], [0, 0, 1, 1], [], []>} : vector<16x8xf32>, vector<8x48xf32>, vector<16x48xf32> -> vector<16x48xf32>
    %179 = arith.divf %176, %178 : vector<16x48xf32>
    %180 = arith.mulf %55, %179 : vector<16x48xf32>
    %cst_55 = arith.constant dense<0.000000e+00> : vector<8x48xf32>
    %181 = tpu.matmul %19, %180, %cst_55 {dimension_numbers = #tpu.dot_dimension_numbers<[1], [0], [0], [1], [0, 0, 1, 1], [], []>} : vector<8x16xf32>, vector<16x48xf32>, vector<8x48xf32> -> vector<8x48xf32>
    %c0_56 = arith.constant 0 : index
    %c0_57 = arith.constant 0 : index
    %182 = vector.load %arg8[%c0_56, %c0_57] : memref<1x48xf32, #tpu.memory_space<vmem>>, vector<1x48xf32>
    %183 = vector.broadcast %182 : vector<1x48xf32> to vector<8x48xf32>
    %184 = arith.addf %181, %183 : vector<8x48xf32>
    %cst_58 = arith.constant 0.000000e+00 : f32
    %185 = vector.broadcast %cst_58 : f32 to vector<8x48xf32>
    %186 = arith.maximumf %184, %185 : vector<8x48xf32>
    %c0_59 = arith.constant 0 : index
    %c0_60 = arith.constant 0 : index
    %187 = vector.load %arg9[%c0_59, %c0_60] : memref<8x48xf32, #tpu.memory_space<vmem>>, vector<8x48xf32>
    tpu.vector_store %arg9[%c0_59, %c0_60], %186 {strides = array<i32>} : memref<8x48xf32, #tpu.memory_space<vmem>>, vector<8x48xf32>,
    return
  }
}

</mosaic_0001>

<llo_original>
// kernel: dependency_gnn_forward.1
$region0: #{dependency_gnn_forward.1}
  #allocation0 [shape = 'u32[]', space=smem, size = 0x4, offset = 0x4, fixed_abs, tag = 'smem constant byte address 0x4 - core index']
  #allocation1 [shape = 'u32[72,128]{1,0:T(1,128)}', space=vmem, size = 0x9000, scoped, tag = 'internal scratch']
  %s0 = inlined_call_operand.vmem [shape: f32[8,32], index: 0, kind: input, shape index: {}]
  %s1 = inlined_call_operand.vmem [shape: s32[16,3], index: 1, kind: input, shape index: {}]
  %s2 = inlined_call_operand.vmem [shape: s32[1,16], index: 2, kind: input, shape index: {}]
  %s3 = inlined_call_operand.vmem [shape: f32[10,16], index: 3, kind: input, shape index: {}]
  %s4 = inlined_call_operand.hbm [shape: f32[2,32,48], index: 4, kind: input, shape index: {}]
  %s5 = inlined_call_operand.vmem [shape: f32[2,48], index: 5, kind: input, shape index: {}]
  %s6 = inlined_call_operand.vmem [shape: f32[16,48], index: 6, kind: input, shape index: {}]
  %s7 = inlined_call_operand.vmem [shape: f32[1,48], index: 7, kind: input, shape index: {}]
  %s8 = inlined_call_operand.vmem [shape: f32[1,48], index: 8, kind: input, shape index: {}]
  %s9 = inlined_call_operand.hbm [shape: f32[8,48], index: 9, kind: output, shape index: {}]
  %s10 = sld [smem:[#allocation0]]
  $region50: #{dependency_gnn_forward.1} parent=0
    _
  %s12 = ssub.s32 1, %s10
  %s13 = scalar_select 0, %s12, %s10
  $region1: #{dependency_gnn_forward.1} parent=0
    #allocation2 [shape = 'u8[32768]{0}', space=vmem, size = 0x8000, scoped, tag = 'input window, operand 4, single buffered']
    #allocation3 [shape = 's32[1]{0}', space=sflag, size = 0x4, scoped, tag = 'scoped memory for dependency_gnn_forward.1']
    #allocation4 [shape = 's32[1]{0}', space=sflag, size = 0x4, scoped, tag = 'scoped memory for dependency_gnn_forward.1']
    #allocation5 [shape = 'u8[4096]{0}', space=vmem, size = 0x1000, scoped, tag = 'output window, operand 0, single buffered']
    %14 = vsyncpa [#allocation3], 0
    %15 = vsyncpa [#allocation4], 0
    // Predicated region
    $region2: #{dependency_gnn_forward.1} parent=1 // pred_check
      _
    $region3: #{dependency_gnn_forward.1} parent=1 // pred_check_branch
      %17 = sbr.rel (0) target = $region5
    $region4: #{dependency_gnn_forward.1} parent=1 // pred_region
      _
    $region5: #{dependency_gnn_forward.1} parent=1 // pred_fallthru
      _
    // Predicated region
    $region6: #{dependency_gnn_forward.1} parent=1 // pred_check
      _
    $region7: #{dependency_gnn_forward.1} parent=1 // pred_check_branch
      %19 = sbr.rel (0) target = $region9
    $region8: #{dependency_gnn_forward.1} parent=1 // pred_region
      _
    $region9: #{dependency_gnn_forward.1} parent=1 // pred_fallthru
      _
    // Predicated region
    $region10: #{dependency_gnn_forward.1} parent=1 // pred_check
      _
    $region11: #{dependency_gnn_forward.1} parent=1 // pred_check_branch
      %21 = sbr.rel (0) target = $region13
    $region12: #{dependency_gnn_forward.1} parent=1 // pred_region
      _
    $region13: #{dependency_gnn_forward.1} parent=1 // pred_fallthru
      _
    // Predicated region
    $region14: #{dependency_gnn_forward.1} parent=1 // pred_check
      _
    $region15: #{dependency_gnn_forward.1} parent=1 // pred_check_branch
      %23 = sbr.rel (0) target = $region17
    $region16: #{dependency_gnn_forward.1} parent=1 // pred_region
      _
    $region17: #{dependency_gnn_forward.1} parent=1 // pred_fallthru
      _
    // Predicated region
    $region18: #{dependency_gnn_forward.1} parent=1 // pred_check
      _
    $region19: #{dependency_gnn_forward.1} parent=1 // pred_check_branch
      %25 = sbr.rel (0) target = $region21
    $region20: #{dependency_gnn_forward.1} parent=1 // pred_region
      %27 = vsyncadd [#allocation3], 0
      %s28 = sshll.u32 %s4, 4
      %s29 = int_to_ptr.hbm [resolvable:$true] %s28
      %s30 = sshll.u32 [#allocation2], 4
      %s31 = int_to_ptr.vmem [resolvable:$true] %s30
      %36 = dma.hbm_to_vmem [thread:$0]  %s29, 1024, %s31, [#allocation3], 128, 128, 8
    $region21: #{dependency_gnn_forward.1} parent=1 // pred_fallthru
      _
    // Predicated region
    $region22: #{dependency_gnn_forward.1} parent=1 // pred_check
      _
    $region23: #{dependency_gnn_forward.1} parent=1 // pred_check_branch
      %38 = sbr.rel (0) target = $region25
    $region24: #{dependency_gnn_forward.1} parent=1 // pred_region
      _
    $region25: #{dependency_gnn_forward.1} parent=1 // pred_fallthru
      _
    // Predicated region
    $region26: #{dependency_gnn_forward.1} parent=1 // pred_check
      _
    $region27: #{dependency_gnn_forward.1} parent=1 // pred_check_branch
      %40 = sbr.rel (0) target = $region29
    $region28: #{dependency_gnn_forward.1} parent=1 // pred_region
      _
    $region29: #{dependency_gnn_forward.1} parent=1 // pred_fallthru
      _
    // Predicated region
    $region30: #{dependency_gnn_forward.1} parent=1 // pred_check
      _
    $region31: #{dependency_gnn_forward.1} parent=1 // pred_check_branch
      %42 = sbr.rel (0) target = $region33
    $region32: #{dependency_gnn_forward.1} parent=1 // pred_region
      _
    $region33: #{dependency_gnn_forward.1} parent=1 // pred_fallthru
      _
    // Predicated region
    $region34: #{dependency_gnn_forward.1} parent=1 // pred_check
      _
    $region35: #{dependency_gnn_forward.1} parent=1 // pred_check_branch
      %44 = sbr.rel (0) target = $region37
    $region36: #{dependency_gnn_forward.1} parent=1 // pred_region
      _
    $region37: #{dependency_gnn_forward.1} parent=1 // pred_fallthru
      _
    // Predicated region
    $region38: #{dependency_gnn_forward.1} parent=1 // pred_check
      _
    $region39: #{dependency_gnn_forward.1} parent=1 // pred_check_branch
      %46 = sbr.rel (0) target = $region41
    $region40: #{dependency_gnn_forward.1} parent=1 // pred_region
      %48 = dma.done [#allocation3], 1024
    $region41: #{dependency_gnn_forward.1} parent=1 // pred_fallthru
      _
    %v49 = vld [vmem:[%s0] sm:$0xff]
    %v50 = vld [vmem:[%s1] sm:$0xff]
    %v51 = vld [vmem:[%s1 + $0x8] sm:$0xff]
    %v52 = vld [vmem:[%s2] sm:$0x1]
    %v53 = vlaneseq
    %v54 = vand.u32 %v53, 127
    %55 = vset.pattern.permute.xlu0 0
    %56 = vperm.xlu0 %55, %v50
    %v57 = vpop.permute.xlu0 %56
    %58 = vset.pattern.permute.xlu0 0
    %59 = vperm.xlu0 %58, %v51
    %v60 = vpop.permute.xlu0 %59
    %vm61 = vcmp.eq.s32.totalorder %v54, %v57
    %vm62 = vcmp.eq.s32.totalorder %v54, %v60
    %v63 = vsel %vm61, 1, 0
    %v64 = vsel %vm62, 1, 0
    %v65 = vcvt.s32.f32 %v63
    %v66 = vcvt.s32.f32 %v64
    %67 = vset.pattern.permute.xlu0 1
    %68 = vperm.xlu0 %67, %v50
    %v69 = vpop.permute.xlu0 %68
    %70 = vset.pattern.permute.xlu0 1
    %71 = vperm.xlu0 %70, %v51
    %v72 = vpop.permute.xlu0 %71
    %vm73 = vcmp.eq.s32.totalorder %v54, %v69
    %vm74 = vcmp.eq.s32.totalorder %v54, %v72
    %v75 = vsel %vm73, 1, 0
    %v76 = vsel %vm74, 1, 0
    %v77 = vcvt.s32.f32 %v75
    %v78 = vcvt.s32.f32 %v76
    %v79 = vlaneseq
    %v80 = vshrl.u32 %v79, 7
    %v81 = vperm.slane %v52, 0
    %vm82 = vcmp.eq.s32.totalorder %v80, %v81
    %v83 = vsel %vm82, 1, 0
    %v84 = vcvt.s32.f32 %v83
    %85 = vset.pattern.permute.xlu0 2
    %86 = vperm.xlu0 %85, %v50
    %v87 = vpop.permute.xlu0 %86
    %88 = vset.pattern.permute.xlu0 2
    %89 = vperm.xlu0 %88, %v51
    %v90 = vpop.permute.xlu0 %89
    %vm91 = vcmp.eq.s32.totalorder %v54, %v87
    %vm92 = vcmp.eq.s32.totalorder %v54, %v90
    %v93 = vsel %vm91, 1, 0
    %v94 = vsel %vm92, 1, 0
    %v95 = vcvt.s32.f32 %v93
    %v96 = vcvt.s32.f32 %v94
    %v97 = vld [vmem:[%s3] sm:$0xff]
    %v98 = vld [vmem:[%s3 + $0x8] sm:$0x3]
    %vm99 = vcmask 80896
    %v100 = vsel %vm99, %v95, 0.0
    %v101 = vsel %vm99, %v96, 0.0
    %v102 = vadd.f32 %v100, %v101
    %v103 = vrot.slane %v102, 4
    %v104 = vadd.f32 %v102, %v103
    %v105 = vrot.slane %v104, 2
    %v106 = vadd.f32 %v104, %v105
    %v107 = vrot.slane %v106, 1
    %v108 = vadd.f32 %v106, %v107
    %v110 = vsel %vm99, %v108, 0
    %vm112 = vcmask 1041408
    %v114 = vsel %vm112, %v98, 0
    %116 = vmatpush.msra.mxu0 0.0
    %117 = vmatpush.msra.mxu0 0.0
    %118 = vmatpush.msra.mxu0 0.0
    %119 = vmatpush.msra.mxu0 0.0
    %120 = vmatpush.msra.mxu0 0.0
    %121 = vmatpush.msra.mxu0 0.0
    %122 = vmatpush.msra.mxu0 0.0
    %123 = vmatpush.msra.mxu0 0.0
    %124 = vmatpush.msra.mxu0 0.0
    %125 = vmatpush.msra.mxu0 0.0
    %126 = vmatpush.msra.mxu0 0.0
    %127 = vmatpush.msra.mxu0 0.0
    %128 = vmatpush.msra.mxu0 0.0
    %129 = vmatpush.msra.mxu0 0.0
    %130 = vmatpush.msra.mxu0 %v114
    %131 = vmatpush.msra.mxu0 %v97
    %132 = vmatmul.f32.gmra.mxu0 %v110
    %v133 = vpop.f32.mrf.mxu0
    %v134 = vadd.f32 0.0, %v133
    %135 = vdwg.mxu0
    %v136 = vmul.f32 %v134, 0.125
    %vm137 = vcmp.ge.s32.totalorder %v50, 10
    %vm138 = vcmp.ge.s32.totalorder %v51, 10
    %v139 = vsel %vm137, 1, 0
    %v140 = vsel %vm138, 1, 0
    %v141 = vcvt.s32.f32 %v139
    %v142 = vcvt.s32.f32 %v140
    %144 = vset.pattern.permute.xlu0 2
    %145 = vperm.xlu0 %144, %v141
    %v146 = vpop.permute.xlu0 %145
    %149 = vset.pattern.permute.xlu0 2
    %150 = vperm.xlu0 %149, %v142
    %v151 = vpop.permute.xlu0 %150
    %v153 = vperm.slane %v136, 0
    %v154 = vmul.f32 %v146, %v153
    %v155 = vmul.f32 %v151, %v153
    %v157 = vsel %vm99, %v95, 0
    %v160 = vsel %vm99, %v96, 0
    %162 = vmatpush.msra.mxu0 0.0
    %163 = vmatpush.msra.mxu0 0.0
    %164 = vmatpush.msra.mxu0 0.0
    %165 = vmatpush.msra.mxu0 0.0
    %166 = vmatpush.msra.mxu0 0.0
    %167 = vmatpush.msra.mxu0 0.0
    %168 = vmatpush.msra.mxu0 0.0
    %169 = vmatpush.msra.mxu0 0.0
    %170 = vmatpush.msra.mxu0 0.0
    %171 = vmatpush.msra.mxu0 0.0
    %172 = vmatpush.msra.mxu0 0.0
    %173 = vmatpush.msra.mxu0 0.0
    %174 = vmatpush.msra.mxu0 0.0
    %175 = vmatpush.msra.mxu0 0.0
    %176 = vmatpush.msra.mxu0 %v114
    %177 = vmatpush.msra.mxu0 %v97
    %178 = vmatmul.f32.gmra.mxu0 %v157
    %v179 = vpop.f32.mrf.mxu0
    %v180 = vadd.f32 %v154, %v179
    %181 = vmatmul.f32.gmra.mxu0 %v160
    %v182 = vpop.f32.mrf.mxu0
    %v183 = vadd.f32 %v155, %v182
    %184 = vdwg.mxu0
    %v185 = vld [vmem:[%s5] sm:$0x3]
    %v186 = vld [vmem:[#allocation2] sm:$0xff]
    %v187 = vld [vmem:[#allocation2 + $0x8] sm:$0xff]
    %v188 = vld [vmem:[#allocation2 + $0x10] sm:$0xff]
    %v189 = vld [vmem:[#allocation2 + $0x18] sm:$0xff]
    %v190 = vperm.slane %v185, 0
    %vm191 = vcmask 261120
    %v193 = vsel %vm191, %v49, 0
    %195 = vmatpush.msra.mxu0 0.0
    %196 = vmatpush.msra.mxu0 0.0
    %197 = vmatpush.msra.mxu0 0.0
    %198 = vmatpush.msra.mxu0 0.0
    %199 = vmatpush.msra.mxu0 0.0
    %200 = vmatpush.msra.mxu0 0.0
    %201 = vmatpush.msra.mxu0 0.0
    %202 = vmatpush.msra.mxu0 0.0
    %203 = vmatpush.msra.mxu0 0.0
    %204 = vmatpush.msra.mxu0 0.0
    %205 = vmatpush.msra.mxu0 0.0
    %206 = vmatpush.msra.mxu0 0.0
    %207 = vmatpush.msra.mxu0 %v189
    %208 = vmatpush.msra.mxu0 %v188
    %209 = vmatpush.msra.mxu0 %v187
    %210 = vmatpush.msra.mxu0 %v186
    %211 = vmatmul.f32.gmra.mxu0 %v193
    %v212 = vpop.f32.mrf.mxu0
    %v213 = vadd.f32 %v190, %v212
    %214 = vdwg.mxu0
    %s215 = scalar_lea.vmem [#allocation2], 32
    %v216 = vld [vmem:[%s215] sm:$0xff]
    %v217 = vld [vmem:[%s215 + $0x8] sm:$0xff]
    %v218 = vld [vmem:[%s215 + $0x10] sm:$0xff]
    %v219 = vld [vmem:[%s215 + $0x18] sm:$0xff]
    %v220 = vperm.slane %v185, 1
    %221 = vmatpush.msra.mxu0 0.0
    %222 = vmatpush.msra.mxu0 0.0
    %223 = vmatpush.msra.mxu0 0.0
    %224 = vmatpush.msra.mxu0 0.0
    %225 = vmatpush.msra.mxu0 0.0
    %226 = vmatpush.msra.mxu0 0.0
    %227 = vmatpush.msra.mxu0 0.0
    %228 = vmatpush.msra.mxu0 0.0
    %229 = vmatpush.msra.mxu0 0.0
    %230 = vmatpush.msra.mxu0 0.0
    %231 = vmatpush.msra.mxu0 0.0
    %232 = vmatpush.msra.mxu0 0.0
    %233 = vmatpush.msra.mxu0 %v219
    %234 = vmatpush.msra.mxu0 %v218
    %235 = vmatpush.msra.mxu0 %v217
    %236 = vmatpush.msra.mxu0 %v216
    %237 = vmatmul.f32.gmra.mxu0 %v193
    %v238 = vpop.f32.mrf.mxu0
    %v239 = vadd.f32 %v220, %v238
    %240 = vdwg.mxu0
    %v241 = vld [vmem:[%s6] sm:$0xff]
    %v242 = vld [vmem:[%s6 + $0x8] sm:$0xff]
    %vm243 = vcmask 130048
    %v245 = vsel %vm243, %v180, 0
    %v248 = vsel %vm243, %v183, 0
    %250 = vmatpush.msra.mxu0 0.0
    %251 = vmatpush.msra.mxu0 0.0
    %252 = vmatpush.msra.mxu0 0.0
    %253 = vmatpush.msra.mxu0 0.0
    %254 = vmatpush.msra.mxu0 0.0
    %255 = vmatpush.msra.mxu0 0.0
    %256 = vmatpush.msra.mxu0 0.0
    %257 = vmatpush.msra.mxu0 0.0
    %258 = vmatpush.msra.mxu0 0.0
    %259 = vmatpush.msra.mxu0 0.0
    %260 = vmatpush.msra.mxu0 0.0
    %261 = vmatpush.msra.mxu0 0.0
    %262 = vmatpush.msra.mxu0 0.0
    %263 = vmatpush.msra.mxu0 0.0
    %264 = vmatpush.msra.mxu0 %v242
    %265 = vmatpush.msra.mxu0 %v241
    %266 = vmatmul.f32.gmra.mxu0 %v245
    %v267 = vpop.f32.mrf.mxu0
    %v268 = vadd.f32 0.0, %v267
    %269 = vmatmul.f32.gmra.mxu0 %v248
    %v270 = vpop.f32.mrf.mxu0
    %v271 = vadd.f32 0.0, %v270
    %272 = vdwg.mxu0
    %vm273 = vcmask 64512
    %v275 = vsel %vm273, %v65, 0
    %v278 = vsel %vm273, %v66, 0
    %280 = vmatpush.msra.mxu0 0.0
    %281 = vmatpush.msra.mxu0 0.0
    %282 = vmatpush.msra.mxu0 0.0
    %283 = vmatpush.msra.mxu0 0.0
    %284 = vmatpush.msra.mxu0 0.0
    %285 = vmatpush.msra.mxu0 0.0
    %286 = vmatpush.msra.mxu0 0.0
    %287 = vmatpush.msra.mxu0 0.0
    %288 = vmatpush.msra.mxu0 0.0
    %289 = vmatpush.msra.mxu0 0.0
    %290 = vmatpush.msra.mxu0 0.0
    %291 = vmatpush.msra.mxu0 0.0
    %292 = vmatpush.msra.mxu0 0.0
    %293 = vmatpush.msra.mxu0 0.0
    %294 = vmatpush.msra.mxu0 0.0
    %295 = vmatpush.msra.mxu0 %v213
    %296 = vmatmul.f32.gmra.mxu0 %v275
    %v297 = vpop.f32.mrf.mxu0
    %v298 = vadd.f32 0.0, %v297
    %299 = vmatmul.f32.gmra.mxu0 %v278
    %v300 = vpop.f32.mrf.mxu0
    %v301 = vadd.f32 0.0, %v300
    %302 = vdwg.mxu0
    %v304 = vsel %vm273, %v77, 0
    %v307 = vsel %vm273, %v78, 0
    %309 = vmatpush.msra.mxu0 0.0
    %310 = vmatpush.msra.mxu0 0.0
    %311 = vmatpush.msra.mxu0 0.0
    %312 = vmatpush.msra.mxu0 0.0
    %313 = vmatpush.msra.mxu0 0.0
    %314 = vmatpush.msra.mxu0 0.0
    %315 = vmatpush.msra.mxu0 0.0
    %316 = vmatpush.msra.mxu0 0.0
    %317 = vmatpush.msra.mxu0 0.0
    %318 = vmatpush.msra.mxu0 0.0
    %319 = vmatpush.msra.mxu0 0.0
    %320 = vmatpush.msra.mxu0 0.0
    %321 = vmatpush.msra.mxu0 0.0
    %322 = vmatpush.msra.mxu0 0.0
    %323 = vmatpush.msra.mxu0 0.0
    %324 = vmatpush.msra.mxu0 %v239
    %325 = vmatmul.f32.gmra.mxu0 %v304
    %v326 = vpop.f32.mrf.mxu0
    %v327 = vadd.f32 0.0, %v326
    %328 = vmatmul.f32.gmra.mxu0 %v307
    %v329 = vpop.f32.mrf.mxu0
    %v330 = vadd.f32 0.0, %v329
    %331 = vdwg.mxu0
    %v332 = vadd.f32 %v298, %v327
    %v333 = vadd.f32 %v301, %v330
    %v334 = vadd.f32 %v332, %v268
    %v335 = vadd.f32 %v333, %v271
    %vm336 = vcmp.gt.f32.partialorder %v334, 0.0
    %vm337 = vcmp.gt.f32.partialorder %v335, 0.0
    %v338 = vmul.f32 %v334, 0.2
    %v339 = vmul.f32 %v335, 0.2
    %v340 = vsel %vm336, %v334, %v338
    %v341 = vsel %vm337, %v335, %v339
    %v342 = vld [vmem:[%s7] sm:$0x1]
    %v344 = vperm.slane %v342, 0
    %v346 = vmul.f32 %v340, %v344
    %v347 = vmul.f32 %v341, %v344
    %vm348 = vcmp.ge.s32.totalorder %v54, 0
    %vm349 = vcmp.lt.s32.totalorder %v54, 16
    %vm350 = vmand %vm348, %vm349
    %v351 = vsel %vm350, 1, 0
    %v352 = vcvt.s32.f32 %v351
    %v353 = vmul.f32 %v346, %v352
    %v354 = vmul.f32 %v347, %v352
    %vm355 = vcmask 392192
    %v356 = vsel %vm355, %v353, 0.0
    %357 = vadd.xlane.f32.xlu0 %v356
    %v358 = vpop.xlane.xlu0 %357
    %v359 = vsel %vm355, %v354, 0.0
    %360 = vadd.xlane.f32.xlu0 %v359
    %v361 = vpop.xlane.xlu0 %360
    %vm362 = vcmp.gt.f32.partialorder %v77, 0.5
    %vm363 = vcmp.gt.f32.partialorder %v78, 0.5
    %v364 = vsel %vm362, %v358, -1e+30
    %v365 = vsel %vm363, %v361, -1e+30
    %v366 = vsel %vm273, %v364, -inf
    %v367 = vsel %vm273, %v365, -inf
    %v368 = vmax.f32 %v366, %v367
    %v369 = vrot.slane %v368, 4
    %v370 = vmax.f32 %v368, %v369
    %v371 = vrot.slane %v370, 2
    %v372 = vmax.f32 %v370, %v371
    %v373 = vrot.slane %v372, 1
    %v374 = vmax.f32 %v372, %v373
    %v375 = vsel %vm362, %v374, 0.0
    %v376 = vsel %vm363, %v374, 0.0
    %v377 = vsel %vm273, %v375, 0.0
    %378 = vadd.xlane.f32.xlu0 %v377
    %v379 = vpop.xlane.xlu0 %378
    %v380 = vsel %vm273, %v376, 0.0
    %381 = vadd.xlane.f32.xlu0 %v380
    %v382 = vpop.xlane.xlu0 %381
    %v383 = vmul.f32 %v358, %v352
    %v384 = vmul.f32 %v361, %v352
    %v385 = vadd.f32 %v383, 0.0
    %v386 = vadd.f32 %v384, 0.0
    %v387 = vmul.f32 %v379, %v352
    %v388 = vmul.f32 %v382, %v352
    %v389 = vadd.f32 %v387, 0.0
    %v390 = vadd.f32 %v388, 0.0
    %vm391 = vcmp.ge.s32.totalorder %v54, 16
    %vm392 = vcmp.lt.s32.totalorder %v54, 32
    %vm393 = vmand %vm391, %vm392
    %v394 = vsel %vm393, 1, 0
    %v395 = vcvt.s32.f32 %v394
    %v396 = vmul.f32 %v346, %v395
    %v397 = vmul.f32 %v347, %v395
    %v398 = vsel %vm355, %v396, 0.0
    %399 = vadd.xlane.f32.xlu0 %v398
    %v400 = vpop.xlane.xlu0 %399
    %v401 = vsel %vm355, %v397, 0.0
    %402 = vadd.xlane.f32.xlu0 %v401
    %v403 = vpop.xlane.xlu0 %402
    %v404 = vsel %vm362, %v400, -1e+30
    %v405 = vsel %vm363, %v403, -1e+30
    %v406 = vsel %vm273, %v404, -inf
    %v407 = vsel %vm273, %v405, -inf
    %v408 = vmax.f32 %v406, %v407
    %v409 = vrot.slane %v408, 4
    %v410 = vmax.f32 %v408, %v409
    %v411 = vrot.slane %v410, 2
    %v412 = vmax.f32 %v410, %v411
    %v413 = vrot.slane %v412, 1
    %v414 = vmax.f32 %v412, %v413
    %v415 = vsel %vm362, %v414, 0.0
    %v416 = vsel %vm363, %v414, 0.0
    %v417 = vsel %vm273, %v415, 0.0
    %418 = vadd.xlane.f32.xlu0 %v417
    %v419 = vpop.xlane.xlu0 %418
    %v420 = vsel %vm273, %v416, 0.0
    %421 = vadd.xlane.f32.xlu0 %v420
    %v422 = vpop.xlane.xlu0 %421
    %v423 = vmul.f32 %v400, %v395
    %v424 = vmul.f32 %v403, %v395
    %v425 = vadd.f32 %v385, %v423
    %v426 = vadd.f32 %v386, %v424
    %v427 = vmul.f32 %v419, %v395
    %v428 = vmul.f32 %v422, %v395
    %v429 = vadd.f32 %v389, %v427
    %v430 = vadd.f32 %v390, %v428
    %vm431 = vcmp.ge.s32.totalorder %v54, 32
    %vm432 = vcmp.lt.s32.totalorder %v54, 48
    %vm433 = vmand %vm431, %vm432
    %v434 = vsel %vm433, 1, 0
    %v435 = vcvt.s32.f32 %v434
    %v436 = vmul.f32 %v346, %v435
    %v437 = vmul.f32 %v347, %v435
    %v438 = vsel %vm355, %v436, 0.0
    %439 = vadd.xlane.f32.xlu0 %v438
    %v440 = vpop.xlane.xlu0 %439
    %v441 = vsel %vm355, %v437, 0.0
    %442 = vadd.xlane.f32.xlu0 %v441
    %v443 = vpop.xlane.xlu0 %442
    %v444 = vsel %vm362, %v440, -1e+30
    %v445 = vsel %vm363, %v443, -1e+30
    %v446 = vsel %vm273, %v444, -inf
    %v447 = vsel %vm273, %v445, -inf
    %v448 = vmax.f32 %v446, %v447
    %v449 = vrot.slane %v448, 4
    %v450 = vmax.f32 %v448, %v449
    %v451 = vrot.slane %v450, 2
    %v452 = vmax.f32 %v450, %v451
    %v453 = vrot.slane %v452, 1
    %v454 = vmax.f32 %v452, %v453
    %v455 = vsel %vm362, %v454, 0.0
    %v456 = vsel %vm363, %v454, 0.0
    %v457 = vsel %vm273, %v455, 0.0
    %458 = vadd.xlane.f32.xlu0 %v457
    %v459 = vpop.xlane.xlu0 %458
    %v460 = vsel %vm273, %v456, 0.0
    %461 = vadd.xlane.f32.xlu0 %v460
    %v462 = vpop.xlane.xlu0 %461
    %v463 = vmul.f32 %v440, %v435
    %v464 = vmul.f32 %v443, %v435
    %v465 = vadd.f32 %v425, %v463
    %v466 = vadd.f32 %v426, %v464
    %v467 = vmul.f32 %v459, %v435
    %v468 = vmul.f32 %v462, %v435
    %v469 = vadd.f32 %v429, %v467
    %v470 = vadd.f32 %v430, %v468
    %v471 = vsub.f32 %v465, %v469
    %v472 = vsub.f32 %v466, %v470
    %v473 = vmul.f32 %v471, 1.442695
    %v474 = vpow.pop %v473
    %v475 = vmul.f32 %v472, 1.442695
    %v476 = vpow.pop %v475
    %v478 = vsel %vm243, %v84, 0
    %480 = vmatpush.msra.mxu0 0.0
    %481 = vmatpush.msra.mxu0 0.0
    %482 = vmatpush.msra.mxu0 0.0
    %483 = vmatpush.msra.mxu0 0.0
    %484 = vmatpush.msra.mxu0 0.0
    %485 = vmatpush.msra.mxu0 0.0
    %486 = vmatpush.msra.mxu0 0.0
    %487 = vmatpush.msra.mxu0 0.0
    %488 = vmatpush.msra.mxu0 0.0
    %489 = vmatpush.msra.mxu0 0.0
    %490 = vmatpush.msra.mxu0 0.0
    %491 = vmatpush.msra.mxu0 0.0
    %492 = vmatpush.msra.mxu0 0.0
    %493 = vmatpush.msra.mxu0 0.0
    %494 = vmatpush.msra.mxu0 %v476
    %495 = vmatpush.msra.mxu0 %v474
    %496 = vmatmul.f32.gmra.mxu0 %v478
    %v497 = vpop.f32.mrf.mxu0
    %v498 = vadd.f32 0.0, %v497
    %499 = vdwg.mxu0
    %500 = vmatpush.msra.mxu0 0.0
    %501 = vmatpush.msra.mxu0 0.0
    %502 = vmatpush.msra.mxu0 0.0
    %503 = vmatpush.msra.mxu0 0.0
    %504 = vmatpush.msra.mxu0 0.0
    %505 = vmatpush.msra.mxu0 0.0
    %506 = vmatpush.msra.mxu0 0.0
    %507 = vmatpush.msra.mxu0 0.0
    %508 = vmatpush.msra.mxu0 0.0
    %509 = vmatpush.msra.mxu0 0.0
    %510 = vmatpush.msra.mxu0 0.0
    %511 = vmatpush.msra.mxu0 0.0
    %512 = vmatpush.msra.mxu0 0.0
    %513 = vmatpush.msra.mxu0 0.0
    %514 = vmatpush.msra.mxu0 0.0
    %515 = vmatpush.msra.mxu0 %v498
    %516 = vmatmul.f32.gmra.mxu0 %v304
    %v517 = vpop.f32.mrf.mxu0
    %v518 = vadd.f32 0.0, %v517
    %519 = vmatmul.f32.gmra.mxu0 %v307
    %v520 = vpop.f32.mrf.mxu0
    %v521 = vadd.f32 0.0, %v520
    %522 = vdwg.mxu0
    %v523 = vrcp.pop %v518
    %v524 = vmul.f32 %v518, %v523
    %v525 = vsub.f32 1.0, %v524
    %v526 = vmul.f32 %v523, %v525
    %v527 = vadd.f32 %v523, %v526
    %vm528 = vweird.f32 %v518
    %vm529 = vweird.f32 %v523
    %vm530 = vmor %vm528, %vm529
    %v531 = vsel %vm530, %v523, %v527
    %v532 = vand.u32 2147483647, %v518
    %vm533 = vcmp.eq.f32.partialorder %v532, 8.507059e+37
    %v534 = vand.u32 %v518, 2147483648
    %v535 = vor.u32 1.1754944e-38, %v534
    %v536 = vsel %vm533, %v535, %v531
    %v537 = vmul.f32 %v474, %v536
    %v538 = vrcp.pop %v521
    %v539 = vmul.f32 %v521, %v538
    %v540 = vsub.f32 1.0, %v539
    %v541 = vmul.f32 %v538, %v540
    %v542 = vadd.f32 %v538, %v541
    %vm543 = vweird.f32 %v521
    %vm544 = vweird.f32 %v538
    %vm545 = vmor %vm543, %vm544
    %v546 = vsel %vm545, %v538, %v542
    %v547 = vand.u32 2147483647, %v521
    %vm548 = vcmp.eq.f32.partialorder %v547, 8.507059e+37
    %v549 = vand.u32 %v521, 2147483648
    %v550 = vor.u32 1.1754944e-38, %v549
    %v551 = vsel %vm548, %v550, %v546
    %v552 = vmul.f32 %v476, %v551
    %v553 = vmul.f32 %v298, %v537
    %v554 = vmul.f32 %v301, %v552
    %v555 = vld [vmem:[%s8] sm:$0x1]
    %v557 = vperm.slane %v555, 0
    %559 = vmatpush.msra.mxu0 0.0
    %560 = vmatpush.msra.mxu0 0.0
    %561 = vmatpush.msra.mxu0 0.0
    %562 = vmatpush.msra.mxu0 0.0
    %563 = vmatpush.msra.mxu0 0.0
    %564 = vmatpush.msra.mxu0 0.0
    %565 = vmatpush.msra.mxu0 0.0
    %566 = vmatpush.msra.mxu0 0.0
    %567 = vmatpush.msra.mxu0 0.0
    %568 = vmatpush.msra.mxu0 0.0
    %569 = vmatpush.msra.mxu0 0.0
    %570 = vmatpush.msra.mxu0 0.0
    %571 = vmatpush.msra.mxu0 0.0
    %572 = vmatpush.msra.mxu0 0.0
    %573 = vmatpush.msra.mxu0 %v554
    %574 = vmatpush.msra.mxu0 %v553
    %575 = vmatmul.f32.gmra.mxu0 %v478
    %v576 = vpop.f32.mrf.mxu0
    %v577 = vadd.f32 %v557, %v576
    %578 = vdwg.mxu0
    %v579 = vmax.f32 %v577, 0.0
    %580 = vst.msk [vmem:[#allocation5] sm:$0xff] %vm355, %v579
    // Predicated region
    $region42: #{dependency_gnn_forward.1} parent=1 // pred_check
      _
    $region43: #{dependency_gnn_forward.1} parent=1 // pred_check_branch
      %582 = sbr.rel (0) target = $region45
    $region44: #{dependency_gnn_forward.1} parent=1 // pred_region
      %584 = vsyncadd [#allocation4], 0
      %s586 = sshll.u32 [#allocation5], 4
      %s587 = int_to_ptr.vmem [resolvable:$true] %s586
      %s588 = sshll.u32 %s9, 4
      %s589 = int_to_ptr.hbm [resolvable:$true] %s588
      %591 = dma.vmem_to_hbm [thread:$0]  %s587, 128, %s589, [#allocation4]
    $region45: #{dependency_gnn_forward.1} parent=1 // pred_fallthru
      _
    // Predicated region
    $region46: #{dependency_gnn_forward.1} parent=1 // pred_check
      _
    $region47: #{dependency_gnn_forward.1} parent=1 // pred_check_branch
      %593 = sbr.rel (0) target = $region49
    $region48: #{dependency_gnn_forward.1} parent=1 // pred_region
      %595 = dma.done [#allocation4], 128
    $region49: #{dependency_gnn_forward.1} parent=1 // pred_fallthru
      _
    %596 = vsyncpa [#allocation3], 1
    %597 = vsyncpa [#allocation4], 1

</llo_original>
